<compile_context>
chip_gen: v7x
topology: tpu7x:2x2x1
jax: 0.10.0
libtpu: 0.0.40
codegen_flags: <defaults>
</compile_context>

<pallas_src>
import functools

import jax
import jax.numpy as jnp
from jax import lax
from jax.experimental import pallas as pl
from jax.experimental.pallas import tpu as pltpu


# ---------------------------------------------------------------------------
# pltpu.roll direction probe (expected np.roll semantics: result[j] = x[j-shift]).
# Probed once on-device so the in-kernel im2col shift direction is robust.
# ---------------------------------------------------------------------------
@functools.lru_cache(maxsize=None)
def _roll_sign() -> int:
    def probe_kernel(x_ref, o_ref):
        o_ref[...] = pltpu.roll(x_ref[...], shift=1, axis=1)

    x = jnp.tile(jnp.arange(128, dtype=jnp.float32), (8, 1))
    y = pl.pallas_call(
        probe_kernel, out_shape=jax.ShapeDtypeStruct((8, 128), jnp.float32)
    )(x)
    # np.roll-style => y[0,0] == 127 => to fetch x[j + s] use shift = -s
    return -1 if float(y[0, 0]) == 127.0 else 1


# ---------------------------------------------------------------------------
# In-VMEM im2col: (C, H*W) -> (9*C, H*W) for a 3x3 SAME conv (pad=1).
# Tap k = kh*3 + kw holds the input shifted by (kh-1, kw-1), zeroed at borders.
# ---------------------------------------------------------------------------
def _im2col_3x3(a, *, H, W, row, col, roll_sign):
    HW = H * W
    taps = []
    for dh in (-1, 0, 1):
        for dw in (-1, 0, 1):
            s = dh * W + dw                          # flat source offset
            if s == 0:
                shifted = a
            else:
                shifted = pltpu.roll(a, shift=(roll_sign * s) % HW, axis=1)
            conds = []
            if dh == -1:
                conds.append(row >= 1)
            elif dh == 1:
                conds.append(row < H - 1)
            if dw == -1:
                conds.append(col >= 1)
            elif dw == 1:
                conds.append(col < W - 1)
            if conds:
                valid = functools.reduce(jnp.logical_and, conds)
                shifted = jnp.where(valid, shifted, 0.0)
            taps.append(shifted)
    return jnp.concatenate(taps, axis=0)             # (9*C, HW), tile-aligned concat


# ---------------------------------------------------------------------------
# Fused kernel: conv1+BN1+ReLU -> conv2+BN2 -> SE -> +identity -> ReLU
# All activations in lane-dense (C, HW) orientation; one batch element per step.
# ---------------------------------------------------------------------------
def se_basic_block_kernel(x_ref, w1_ref, s1_ref, b1_ref,
                          w2_ref, s2_ref, b2_ref,
                          fw1_ref, fb1_ref, fw2_ref, fb2_ref,
                          o_ref, *, H, W, roll_sign):
    HW = H * W
    x = x_ref[0]                                              # (Cin, HW)

    idx = lax.broadcasted_iota(jnp.int32, (1, HW), 1)
    row = idx // W
    col = idx % W
    im2col = functools.partial(_im2col_3x3, H=H, W=W, row=row, col=col,
                               roll_sign=roll_sign)

    # conv1 (3x3, pad=1) + BN1 (folded) + ReLU  -- single K=9*Cin MXU matmul
    h1 = jnp.dot(w1_ref[...], im2col(x), preferred_element_type=jnp.float32)
    h1 = jnp.maximum(h1 * s1_ref[...] + b1_ref[...], 0.0)     # (Cout, HW)

    # conv2 (3x3, pad=1) + BN2 (folded)  -- h1 stays in VMEM
    out = jnp.dot(w2_ref[...], im2col(h1), preferred_element_type=jnp.float32)
    out = out * s2_ref[...] + b2_ref[...]                     # (Cout, HW)

    # Squeeze-Excitation on the f32 result: pool over lanes -> 2 tiny FCs
    pooled = jnp.mean(out, axis=1, keepdims=True)             # (Cout, 1)
    se = jnp.dot(fw1_ref[...], pooled, preferred_element_type=jnp.float32) + fb1_ref[...]
    se = jnp.maximum(se, 0.0)                                 # (Cr, 1)
    se = jnp.dot(fw2_ref[...], se, preferred_element_type=jnp.float32) + fb2_ref[...]
    se = jax.nn.sigmoid(se)                                   # (Cout, 1)

    # channel scale + residual (downsample=None) + final ReLU
    o_ref[0] = jnp.maximum(out * se + x, 0.0)


# ---------------------------------------------------------------------------
# Wrapper: one-time weight layout prep + pallas_call (no im2col, no transposes)
# ---------------------------------------------------------------------------
def se_basic_block(x_nchw, params):
    """x_nchw: (N, C, H, W) float32 -> (N, C, H, W) float32."""
    n, cin, h, w = x_nchw.shape
    hw = h * w
    cout = params["w1"].shape[-1]
    cr = params["se_w1"].shape[-1]
    assert cin == cout, "downsample=None requires inplanes == planes"

    # HWIO (3,3,Ci,Co) -> (Co, 9*Ci), column index = (kh*3+kw)*Ci + ci
    def flatten_conv(wt):
        ci, co = wt.shape[2], wt.shape[3]
        return jnp.transpose(wt.reshape(9, ci, co), (2, 0, 1)).reshape(co, 9 * ci)

    w1 = flatten_conv(params["w1"])
    w2 = flatten_conv(params["w2"])
    s1 = params["scale1"].reshape(cout, 1)
    b1 = params["bias1"].reshape(cout, 1)
    s2 = params["scale2"].reshape(cout, 1)
    b2 = params["bias2"].reshape(cout, 1)
    fw1 = params["se_w1"].T                    # (Cr, C)
    fb1 = params["se_b1"].reshape(cr, 1)
    fw2 = params["se_w2"].T                    # (C, Cr)
    fb2 = params["se_b2"].reshape(cout, 1)

    x_flat = x_nchw.reshape(n, cin, hw)        # NCHW -> (N, C, HW): pure reshape

    const2 = lambda i: (0, 0)
    batched = lambda i: (i, 0, 0)

    out = pl.pallas_call(
        functools.partial(se_basic_block_kernel, H=h, W=w, roll_sign=_roll_sign()),
        out_shape=jax.ShapeDtypeStruct((n, cout, hw), jnp.float32),
        grid=(n,),
        in_specs=[
            pl.BlockSpec((1, cin, hw), batched),      # x (also residual identity)
            pl.BlockSpec((cout, 9 * cin), const2),    # conv1 weight
            pl.BlockSpec((cout, 1), const2),          # bn1 scale
            pl.BlockSpec((cout, 1), const2),          # bn1 bias
            pl.BlockSpec((cout, 9 * cout), const2),   # conv2 weight
            pl.BlockSpec((cout, 1), const2),          # bn2 scale
            pl.BlockSpec((cout, 1), const2),          # bn2 bias
            pl.BlockSpec((cr, cout), const2),         # SE fc1 weight
            pl.BlockSpec((cr, 1), const2),            # SE fc1 bias
            pl.BlockSpec((cout, cr), const2),         # SE fc2 weight
            pl.BlockSpec((cout, 1), const2),          # SE fc2 bias
        ],
        out_specs=pl.BlockSpec((1, cout, hw), batched),
        compiler_params=pltpu.CompilerParams(dimension_semantics=("parallel",)),
    )(x_flat, w1, s1, b1, w2, s2, b2, fw1, fb1, fw2, fb2)

    return out.reshape(n, cout, h, w)


# ---------------------------------------------------------------------------
# Pure-JAX reference (same math, via lax.conv) for correctness check
# ---------------------------------------------------------------------------
def reference(x, params):
    conv = lambda a, wt: lax.conv_general_dilated(
        a, wt, (1, 1), "SAME", dimension_numbers=("NCHW", "HWIO", "NCHW"))
    bc = lambda v: v.reshape(1, -1, 1, 1)
    h1 = jnp.maximum(conv(x, params["w1"]) * bc(params["scale1"]) + bc(params["bias1"]), 0.0)
    out = conv(h1, params["w2"]) * bc(params["scale2"]) + bc(params["bias2"])
    pooled = out.mean(axis=(2, 3))                                    # (N, C)
    s = jnp.maximum(pooled @ params["se_w1"] + params["se_b1"], 0.0)
    s = jax.nn.sigmoid(s @ params["se_w2"] + params["se_b2"])
    out = out * s[:, :, None, None]
    return jnp.maximum(out + x, 0.0)


if __name__ == "__main__":
    # SEBasicBlock(inplanes=16, planes=16, stride=1, downsample=None, reduction_ratio=8)
    N, C, H, W = 2, 16, 16, 16
    R = 8
    CR = C // R
    EPS = 1e-5

    key = jax.random.PRNGKey(0)
    ks = jax.random.split(key, 14)

    # conv weights (HWIO), BN folded into scale/bias (inference-mode BN)
    w1 = 0.1 * jax.random.normal(ks[0], (3, 3, C, C), jnp.float32)
    w2 = 0.1 * jax.random.normal(ks[1], (3, 3, C, C), jnp.float32)

    def fold_bn(kg, kb, km, kv):
        gamma = 1.0 + 0.1 * jax.random.normal(kg, (C,), jnp.float32)
        beta = 0.1 * jax.random.normal(kb, (C,), jnp.float32)
        mean = 0.1 * jax.random.normal(km, (C,), jnp.float32)
        var = jnp.abs(jax.random.normal(kv, (C,), jnp.float32)) + 0.5
        scale = gamma / jnp.sqrt(var + EPS)
        bias = beta - mean * scale
        return scale, bias

    scale1, bias1 = fold_bn(ks[2], ks[3], ks[4], ks[5])
    scale2, bias2 = fold_bn(ks[6], ks[7], ks[8], ks[9])

    # SqueezeExcitation: avgpool -> FC(C->C/R)+ReLU -> FC(C/R->C)+sigmoid -> scale
    se_w1 = 0.2 * jax.random.normal(ks[10], (C, CR), jnp.float32)
    se_b1 = 0.1 * jax.random.normal(ks[11], (CR,), jnp.float32)
    se_w2 = 0.2 * jax.random.normal(ks[12], (CR, C), jnp.float32)
    se_b2 = jnp.zeros((C,), jnp.float32)

    params = dict(w1=w1, scale1=scale1, bias1=bias1,
                  w2=w2, scale2=scale2, bias2=bias2,
                  se_w1=se_w1, se_b1=se_b1, se_w2=se_w2, se_b2=se_b2)

    # input in PyTorch NCHW convention
    x_nchw = jax.random.normal(ks[13], (N, C, H, W), jnp.float32)

    out = jax.block_until_ready(se_basic_block(x_nchw, params))
    ref = jax.block_until_ready(reference(x_nchw, params))

    assert out.shape == (N, C, H, W)
    err = float(jnp.max(jnp.abs(out - ref)))
    assert jnp.allclose(out, ref, atol=2e-4, rtol=2e-4), err
    print("KERNEL_OK")
</pallas_src>

<mosaic_0001>
module attributes {stable_mosaic.version = 11 : i64} {
  func.func @probe_kernel(%arg0: memref<8x128xf32, #tpu.memory_space<vmem>>, %arg1: memref<8x128xf32, #tpu.memory_space<vmem>>) attributes {dimension_semantics = [], scalar_prefetch = 0 : i64, scratch_operands = 0 : i64, tpu.core_type = #tpu.core_type<tc>} {
    %c0 = arith.constant 0 : index
    %c0_0 = arith.constant 0 : index
    %0 = vector.load %arg0[%c0, %c0_0] : memref<8x128xf32, #tpu.memory_space<vmem>>, vector<8x128xf32>
    %c1_i32 = arith.constant 1 : i32
    %1 = tpu.dynamic_rotate %0 by %c1_i32 dim 1 : vector<8x128xf32>, i32 -> vector<8x128xf32>
    %c0_1 = arith.constant 0 : index
    %c0_2 = arith.constant 0 : index
    %2 = vector.load %arg1[%c0_1, %c0_2] : memref<8x128xf32, #tpu.memory_space<vmem>>, vector<8x128xf32>
    tpu.vector_store %arg1[%c0_1, %c0_2], %1 {strides = array<i32>} : memref<8x128xf32, #tpu.memory_space<vmem>>, vector<8x128xf32>,
    return
  }
}

</mosaic_0001>

<llo_original>
// kernel: tpu_custom_call.1
$region0: #{tpu_custom_call.1}
  #allocation0 [shape = 'u32[]', space=smem, size = 0x4, offset = 0x4, fixed_abs, tag = 'smem constant byte address 0x4 - core index']
  #allocation1 [shape = 'u32[144,128]{1,0:T(1,128)}', space=vmem, size = 0x12000, scoped, tag = 'internal scratch']
  %s0 = inlined_call_operand.hbm [shape: f32[8,128], index: 0, kind: input, shape index: {}]
  %s1 = inlined_call_operand.hbm [shape: f32[8,128], index: 1, kind: output, shape index: {}]
  %s2 = sld [smem:[#allocation0]]
  $region18: #{tpu_custom_call.1} parent=0
    _
  %s4 = ssub.s32 1, %s2
  %s5 = scalar_select 0, %s4, %s2
  $region1: #{tpu_custom_call.1} parent=0
    #allocation2 [shape = 'u8[4096]{0}', space=vmem, size = 0x1000, scoped, tag = 'input window, operand 0, single buffered']
    #allocation3 [shape = 's32[1]{0}', space=sflag, size = 0x4, scoped, tag = 'scoped memory for tpu_custom_call.1']
    #allocation4 [shape = 's32[1]{0}', space=sflag, size = 0x4, scoped, tag = 'scoped memory for tpu_custom_call.1']
    #allocation5 [shape = 'u8[4096]{0}', space=vmem, size = 0x1000, scoped, tag = 'output window, operand 0, single buffered']
    %6 = vsyncpa [#allocation3], 0
    %7 = vsyncpa [#allocation4], 0
    // Predicated region
    $region2: #{tpu_custom_call.1} parent=1 // pred_check
      _
    $region3: #{tpu_custom_call.1} parent=1 // pred_check_branch
      %9 = sbr.rel (0) target = $region5
    $region4: #{tpu_custom_call.1} parent=1 // pred_region
      %s11 = ssub.s32 128, 128
      %12 = vsyncadd [#allocation3], %s11
      %s14 = sshll.u32 [#allocation2], 4
      %s15 = int_to_ptr.vmem [resolvable:$true] %s14
      %17 = dma.hbm_to_vmem [thread:$0]  %s0, 128, %s15, [#allocation3]
    $region5: #{tpu_custom_call.1} parent=1 // pred_fallthru
      _
    // Predicated region
    $region6: #{tpu_custom_call.1} parent=1 // pred_check
      _
    $region7: #{tpu_custom_call.1} parent=1 // pred_check_branch
      %19 = sbr.rel (0) target = $region9
    $region8: #{tpu_custom_call.1} parent=1 // pred_region
      %20 = dma.done [#allocation3], 128
    $region9: #{tpu_custom_call.1} parent=1 // pred_fallthru
      _
    %v21 = vld [vmem:[#allocation2] sm:$0xff]
    %22 = vrot.lane.b32.xlu0 %v21, 1
    %v23 = vpop.permute.xlu0 %22
    %24 = vst [vmem:[#allocation5] sm:$0xff] %v23
    // Predicated region
    $region10: #{tpu_custom_call.1} parent=1 // pred_check
      _
    $region11: #{tpu_custom_call.1} parent=1 // pred_check_branch
      %26 = sbr.rel (0) target = $region13
    $region12: #{tpu_custom_call.1} parent=1 // pred_region
      %s28 = ssub.s32 128, 128
      %29 = vsyncadd [#allocation4], %s28
      %s31 = sshll.u32 [#allocation5], 4
      %s32 = int_to_ptr.vmem [resolvable:$true] %s31
      %34 = dma.vmem_to_hbm [thread:$0]  %s32, 128, %s1, [#allocation4]
    $region13: #{tpu_custom_call.1} parent=1 // pred_fallthru
      _
    // Predicated region
    $region14: #{tpu_custom_call.1} parent=1 // pred_check
      _
    $region15: #{tpu_custom_call.1} parent=1 // pred_check_branch
      %36 = sbr.rel (0) target = $region17
    $region16: #{tpu_custom_call.1} parent=1 // pred_region
      %37 = dma.done [#allocation4], 128
    $region17: #{tpu_custom_call.1} parent=1 // pred_fallthru
      _
    %38 = vsyncpa [#allocation3], 1
    %39 = vsyncpa [#allocation4], 1

</llo_original>
